<compile_context>
chip_gen: v5e
topology: v5e:2x2
jax: 0.10.0
libtpu: 0.0.40
codegen_flags: <defaults>
</compile_context>

<pallas_src>
import jax
import jax.numpy as jnp
from jax.experimental import pallas as pl
from jax.experimental.pallas import tpu as pltpu


_LANE_CANDIDATES = (1024, 512, 256, 128)   # widest lane dim that divides n, no pad
_TARGET_BLOCK_ELEMS = 512 * 1024           # ~2 MiB of f32 per pipelined block


def _soft_exponential_kernel(alpha_ref, x_ref, o_ref):
    """Elementwise soft-exponential on one (block_rows, lanes) tile.

    alpha_ref : SMEM ref, shape (1,), float32 — the scalar parameter.
    x_ref     : VMEM ref, (block_rows, lanes) input tile (native float dtype).
    o_ref     : VMEM ref, (block_rows, lanes) output tile (same dtype as input).
    """
    a = alpha_ref[0]

    @pl.when(a == 0.0)
    def _():
        o_ref[...] = x_ref[...]

    @pl.when(a < 0.0)
    def _():
        x = x_ref[...].astype(jnp.float32)
        inv_a = 1.0 / a  # scalar reciprocal hoisted off the vector units
        o_ref[...] = (-jnp.log(1.0 - a * (x + a)) * inv_a).astype(o_ref.dtype)

    @pl.when(a > 0.0)
    def _():
        x = x_ref[...].astype(jnp.float32)
        inv_a = 1.0 / a
        o_ref[...] = ((jnp.exp(a * x) - 1.0) * inv_a + a).astype(o_ref.dtype)


def soft_exponential_pallas(x, alpha):
    """Apply the soft-exponential activation elementwise via a Pallas TPU kernel.

    x     : any-shaped float array (matches PyTorch's "(N, *)" contract).
    alpha : python float or 0-d array — the module's scalar parameter.
    """
    orig_shape = x.shape
    orig_dtype = x.dtype
    if not jnp.issubdtype(orig_dtype, jnp.floating):
        x = x.astype(jnp.float32)

    xf = x.reshape(-1)          # flatten is a free (contiguous) reshape
    n = xf.shape[0]

    # Pick the widest lane dim that divides n (no padding pass in that case).
    lanes = None
    for w in _LANE_CANDIDATES:
        if n % w == 0:
            lanes = w
            break
    padded_n = n
    if lanes is None:
        lanes = _LANE_CANDIDATES[0]
        padded_n = ((n + lanes - 1) // lanes) * lanes
        xf = jnp.pad(xf, (0, padded_n - n))

    rows = padded_n // lanes
    x2d = xf.reshape(rows, lanes)

    # ~2 MiB-of-f32-equivalent blocks; row count stays a multiple of 32 (covers
    # f32/bf16/fp8 sublane packing).  Small inputs use one full-extent block.
    block_rows_target = max(32, _TARGET_BLOCK_ELEMS // lanes)
    block_rows = rows if rows <= block_rows_target else block_rows_target
    grid = (pl.cdiv(rows, block_rows),)      # ragged last block is masked by Pallas

    alpha_arr = jnp.asarray(alpha, dtype=jnp.float32).reshape((1,))

    itemsize = jnp.dtype(x2d.dtype).itemsize
    cost = pl.CostEstimate(
        flops=5 * padded_n,
        transcendentals=padded_n,
        bytes_accessed=2 * padded_n * itemsize,
    )

    out2d = pl.pallas_call(
        _soft_exponential_kernel,
        out_shape=jax.ShapeDtypeStruct((rows, lanes), x2d.dtype),
        grid=grid,
        in_specs=[
            pl.BlockSpec(memory_space=pltpu.SMEM),                    # alpha scalar
            pl.BlockSpec((block_rows, lanes), lambda i: (i, 0)),      # x block
        ],
        out_specs=pl.BlockSpec((block_rows, lanes), lambda i: (i, 0)),
        compiler_params=pltpu.CompilerParams(
            dimension_semantics=("parallel",),
        ),
        cost_estimate=cost,
    )(alpha_arr, x2d)

    out = out2d.reshape(-1)
    if padded_n != n:
        out = out[:n]
    return out.reshape(orig_shape).astype(orig_dtype)


def _soft_exponential_ref(x, alpha):
    """Pure-JAX reference mirroring the PyTorch forward pass (trace-safe)."""
    a = jnp.float32(alpha)
    xf = x.astype(jnp.float32)
    safe_a = jnp.where(a == 0.0, jnp.float32(1.0), a)
    neg = -jnp.log(1.0 - a * (xf + a)) / safe_a
    pos = (jnp.exp(a * xf) - 1.0) / safe_a + a
    out = jnp.where(a == 0.0, xf, jnp.where(a < 0.0, neg, pos))
    return out.astype(x.dtype)


if __name__ == "__main__":
    key = jax.random.PRNGKey(0)
    # Shape consistent with "(N, *)": a small NCHW-like tensor.
    x = jax.random.normal(key, (2, 4, 16, 16), dtype=jnp.float32)

    # alpha = 0.0 is the module's default init; 0.5 / -0.1 exercise the other
    # branches.  alpha = -0.1 keeps log's argument positive for realistic normal
    # samples; equal_nan=True guards any legitimately-NaN elements (both the
    # kernel and the reference would produce them from the same formula).
    for a in (0.0, 0.5, -0.1):
        out = jax.block_until_ready(soft_exponential_pallas(x, a))
        ref = _soft_exponential_ref(x, a)
        assert out.shape == x.shape and out.dtype == x.dtype
        assert jnp.allclose(out, ref, atol=1e-5, rtol=1e-5, equal_nan=True), a

    # Ragged element count (not a multiple of 128) exercises the pad fallback path.
    x2 = jax.random.normal(jax.random.PRNGKey(1), (3, 5, 7), dtype=jnp.float32)
    for a in (0.5, -0.1):
        out = jax.block_until_ready(soft_exponential_pallas(x2, a))
        ref = _soft_exponential_ref(x2, a)
        assert out.shape == x2.shape and out.dtype == x2.dtype
        assert jnp.allclose(out, ref, atol=1e-5, rtol=1e-5, equal_nan=True), a

    print("KERNEL_OK")
</pallas_src>

<mosaic_0001>
module attributes {stable_mosaic.version = 11 : i64} {
  func.func @_soft_exponential_kernel(%arg0: i32, %arg1: memref<1xf32, #tpu.memory_space<smem>>, %arg2: memref<2x1024xf32, #tpu.memory_space<vmem>>, %arg3: memref<2x1024xf32, #tpu.memory_space<vmem>>) attributes {dimension_semantics = [#tpu.dimension_semantics<parallel>], iteration_bounds = array<i64: 1>, scalar_prefetch = 0 : i64, scratch_operands = 0 : i64, tpu.core_type = #tpu.core_type<tc>, window_params = [{transform_indices = @transform_0, window_bounds = array<i64: 1>}, {transform_indices = @transform_1, window_bounds = array<i64: 2, 1024>}, {transform_indices = @transform_2, window_bounds = array<i64: 2, 1024>}]} {
    %c0 = arith.constant 0 : index
    %0 = memref.load %arg1[%c0] : memref<1xf32, #tpu.memory_space<smem>>
    %cst = arith.constant 0.000000e+00 : f32
    %1 = arith.cmpf oeq, %0, %cst : f32
    %2 = arith.extui %1 : i1 to i32
    %c0_i32 = arith.constant 0 : i32
    %3 = arith.cmpi ne, %2, %c0_i32 : i32
    scf.if %3 {
      %c0_4 = arith.constant 0 : index
      %c0_5 = arith.constant 0 : index
      %10 = vector.load %arg2[%c0_4, %c0_5] : memref<2x1024xf32, #tpu.memory_space<vmem>>, vector<2x1024xf32>
      %c0_6 = arith.constant 0 : index
      %c0_7 = arith.constant 0 : index
      %11 = vector.load %arg3[%c0_6, %c0_7] : memref<2x1024xf32, #tpu.memory_space<vmem>>, vector<2x1024xf32>
      tpu.vector_store %arg3[%c0_6, %c0_7], %10 {strides = array<i32>} : memref<2x1024xf32, #tpu.memory_space<vmem>>, vector<2x1024xf32>,
    } else {
    }
    %cst_0 = arith.constant 0.000000e+00 : f32
    %4 = arith.cmpf olt, %0, %cst_0 : f32
    %5 = arith.extui %4 : i1 to i32
    %c0_i32_1 = arith.constant 0 : i32
    %6 = arith.cmpi ne, %5, %c0_i32_1 : i32
    scf.if %6 {
      %c0_4 = arith.constant 0 : index
      %c0_5 = arith.constant 0 : index
      %10 = vector.load %arg2[%c0_4, %c0_5] : memref<2x1024xf32, #tpu.memory_space<vmem>>, vector<2x1024xf32>
      %cst_6 = arith.constant 1.000000e+00 : f32
      %11 = arith.divf %cst_6, %0 : f32
      %12 = vector.broadcast %0 : f32 to vector<2x1024xf32>
      %13 = arith.addf %10, %12 : vector<2x1024xf32>
      %14 = vector.broadcast %0 : f32 to vector<2x1024xf32>
      %15 = arith.mulf %14, %13 : vector<2x1024xf32>
      %cst_7 = arith.constant 1.000000e+00 : f32
      %16 = vector.broadcast %cst_7 : f32 to vector<2x1024xf32>
      %17 = arith.subf %16, %15 : vector<2x1024xf32>
      %18 = math.log %17 : vector<2x1024xf32>
      %cst_8 = arith.constant 0.000000e+00 : f32
      %19 = vector.broadcast %cst_8 : f32 to vector<2x1024xf32>
      %20 = arith.subf %19, %18 : vector<2x1024xf32>
      %21 = vector.broadcast %11 : f32 to vector<2x1024xf32>
      %22 = arith.mulf %20, %21 : vector<2x1024xf32>
      %c0_9 = arith.constant 0 : index
      %c0_10 = arith.constant 0 : index
      %23 = vector.load %arg3[%c0_9, %c0_10] : memref<2x1024xf32, #tpu.memory_space<vmem>>, vector<2x1024xf32>
      tpu.vector_store %arg3[%c0_9, %c0_10], %22 {strides = array<i32>} : memref<2x1024xf32, #tpu.memory_space<vmem>>, vector<2x1024xf32>,
    } else {
    }
    %cst_2 = arith.constant 0.000000e+00 : f32
    %7 = arith.cmpf ogt, %0, %cst_2 : f32
    %8 = arith.extui %7 : i1 to i32
    %c0_i32_3 = arith.constant 0 : i32
    %9 = arith.cmpi ne, %8, %c0_i32_3 : i32
    scf.if %9 {
      %c0_4 = arith.constant 0 : index
      %c0_5 = arith.constant 0 : index
      %10 = vector.load %arg2[%c0_4, %c0_5] : memref<2x1024xf32, #tpu.memory_space<vmem>>, vector<2x1024xf32>
      %cst_6 = arith.constant 1.000000e+00 : f32
      %11 = arith.divf %cst_6, %0 : f32
      %12 = vector.broadcast %0 : f32 to vector<2x1024xf32>
      %13 = arith.mulf %12, %10 : vector<2x1024xf32>
      %14 = math.exp %13 : vector<2x1024xf32>
      %cst_7 = arith.constant 1.000000e+00 : f32
      %15 = vector.broadcast %cst_7 : f32 to vector<2x1024xf32>
      %16 = arith.subf %14, %15 : vector<2x1024xf32>
      %17 = vector.broadcast %11 : f32 to vector<2x1024xf32>
      %18 = arith.mulf %16, %17 : vector<2x1024xf32>
      %19 = vector.broadcast %0 : f32 to vector<2x1024xf32>
      %20 = arith.addf %18, %19 : vector<2x1024xf32>
      %c0_8 = arith.constant 0 : index
      %c0_9 = arith.constant 0 : index
      %21 = vector.load %arg3[%c0_8, %c0_9] : memref<2x1024xf32, #tpu.memory_space<vmem>>, vector<2x1024xf32>
      tpu.vector_store %arg3[%c0_8, %c0_9], %20 {strides = array<i32>} : memref<2x1024xf32, #tpu.memory_space<vmem>>, vector<2x1024xf32>,
    } else {
    }
    return
  }
  func.func @transform_0(%arg0: i32) -> i32 {
    %c0_i32 = arith.constant 0 : i32
    %c0_i32_0 = arith.constant 0 : i32
    return %c0_i32 : i32
  }
  func.func @transform_1(%arg0: i32) -> (i32, i32) {
    %c0_i32 = arith.constant 0 : i32
    %c0_i32_0 = arith.constant 0 : i32
    return %arg0, %c0_i32 : i32, i32
  }
  func.func @transform_2(%arg0: i32) -> (i32, i32) {
    %c0_i32 = arith.constant 0 : i32
    %c0_i32_0 = arith.constant 0 : i32
    return %arg0, %c0_i32 : i32, i32
  }
}

</mosaic_0001>

<llo_original>
// kernel: tpu_custom_call.1
$region0: #{tpu_custom_call.1}
  #allocation0 [shape = 'u32[]', space=smem, size = 0x4, offset = 0x4, fixed_abs, tag = 'smem constant byte address 0x4 - core index']
  #allocation1 [shape = 'u32[72,128]{1,0:T(1,128)}', space=vmem, size = 0x9000, scoped, tag = 'internal scratch']
  #allocation2 [shape = 'f32[1]{0:T(128)S(6)}', space=smem, size = 0x200, scoped, tag = 'scoped memory for tpu_custom_call.1']
  %s0 = inlined_call_operand.<no memory space> [shape: f32[1], index: 0, kind: input, shape index: {}]
  %s1 = inlined_call_operand.hbm [shape: f32[2,1024], index: 1, kind: input, shape index: {}]
  %s2 = inlined_call_operand.hbm [shape: f32[2,1024], index: 2, kind: output, shape index: {}]
  %s3 = sld [smem:[#allocation0]]
  $region34: #{tpu_custom_call.1} parent=0
    _
  %s5 = ssub.s32 1, %s3
  %s6 = scalar_select 0, %s5, %s3
  %7 = sst [smem:[#allocation2]] %s0
  $region1: #{tpu_custom_call.1} parent=0
    #allocation3 [shape = 'u8[8192]{0}', space=vmem, size = 0x2000, scoped, tag = 'input window, operand 1, single buffered']
    #allocation4 [shape = 's32[1]{0}', space=sflag, size = 0x4, scoped, tag = 'scoped memory for tpu_custom_call.1']
    #allocation5 [shape = 's32[1]{0}', space=sflag, size = 0x4, scoped, tag = 'scoped memory for tpu_custom_call.1']
    #allocation6 [shape = 'u8[8192]{0}', space=vmem, size = 0x2000, scoped, tag = 'output window, operand 0, single buffered']
    %8 = vsyncpa [#allocation4], 0
    %9 = vsyncpa [#allocation5], 0
    // Predicated region
    $region2: #{tpu_custom_call.1} parent=1 // pred_check
      _
    $region3: #{tpu_custom_call.1} parent=1 // pred_check_branch
      %11 = sbr.rel (0) target = $region5
    $region4: #{tpu_custom_call.1} parent=1 // pred_region
      _
    $region5: #{tpu_custom_call.1} parent=1 // pred_fallthru
      _
    // Predicated region
    $region6: #{tpu_custom_call.1} parent=1 // pred_check
      _
    $region7: #{tpu_custom_call.1} parent=1 // pred_check_branch
      %13 = sbr.rel (0) target = $region9
    $region8: #{tpu_custom_call.1} parent=1 // pred_region
      %15 = vsyncadd [#allocation4], 0
      %s17 = sshll.u32 %s1, 4
      %s18 = int_to_ptr.hbm [resolvable:$true] %s17
      %s19 = sshll.u32 [#allocation3], 4
      %s20 = int_to_ptr.vmem [resolvable:$true] %s19
      %22 = dma.hbm_to_vmem [thread:$0]  %s18, 256, %s20, [#allocation4]
    $region9: #{tpu_custom_call.1} parent=1 // pred_fallthru
      _
    // Predicated region
    $region10: #{tpu_custom_call.1} parent=1 // pred_check
      _
    $region11: #{tpu_custom_call.1} parent=1 // pred_check_branch
      %24 = sbr.rel (0) target = $region13
    $region12: #{tpu_custom_call.1} parent=1 // pred_region
      %26 = dma.done [#allocation4], 256
    $region13: #{tpu_custom_call.1} parent=1 // pred_fallthru
      _
    %s27 = sld [smem:[#allocation2]]
    %p28 = scmp.eq.f32.partialorder %s27, 0.0
    // Predicated region
    $region14: #{tpu_custom_call.1} parent=1 // pred_check
      %p29 = pneg %p28
    $region15: #{tpu_custom_call.1} parent=1 // pred_check_branch
      %31 = sbr.rel (%p29) target = $region17
    $region16: #{tpu_custom_call.1} parent=1 // pred_region
      %v32 = vld [vmem:[#allocation3] sm:$0xff]
      %v33 = vld [vmem:[#allocation3 + $0x8] sm:$0xff]
      %34 = vst [vmem:[#allocation6] sm:$0xff] %v32
      %35 = vst [vmem:[#allocation6 + $0x8] sm:$0xff] %v33
    $region17: #{tpu_custom_call.1} parent=1 // pred_fallthru
      _
    %p36 = scmp.lt.f32.partialorder %s27, 0.0
    // Predicated region
    $region18: #{tpu_custom_call.1} parent=1 // pred_check
      %p37 = pneg %p36
    $region19: #{tpu_custom_call.1} parent=1 // pred_check_branch
      %39 = sbr.rel (%p37) target = $region21
    $region20: #{tpu_custom_call.1} parent=1 // pred_region
      %v40 = vld [vmem:[#allocation3] sm:$0xff]
      %v41 = vld [vmem:[#allocation3 + $0x8] sm:$0xff]
      %v42 = vstv %s27
      %v43 = vrcp.pop %v42
      %v44 = vmul.f32 %v42, %v43
      %v45 = vsub.f32 1.0, %v44
      %v46 = vmul.f32 %v43, %v45
      %v47 = vadd.f32 %v43, %v46
      %vm48 = vweird.f32 %v42
      %vm49 = vweird.f32 %v43
      %vm50 = vmor %vm48, %vm49
      %v51 = vsel %vm50, %v43, %v47
      %v52 = vand.u32 2147483647, %v42
      %vm53 = vcmp.eq.f32.partialorder %v52, 8.507059e+37
      %v54 = vand.u32 %v42, 2147483648
      %v55 = vor.u32 1.1754944e-38, %v54
      %v56 = vsel %vm53, %v55, %v51
      %s57 = vtos %v56
      %v58 = vstv %s27
      %v59 = vadd.f32 %v40, %v58
      %v60 = vadd.f32 %v41, %v58
      %v61 = vmul.f32 %v58, %v59
      %v62 = vmul.f32 %v58, %v60
      %v63 = vsub.f32 1.0, %v61
      %v64 = vsub.f32 1.0, %v62
      %v65 = vlog2.pop %v63
      %v66 = vmul.f32 %v65, 0.6931472
      %v67 = vlog2.pop %v64
      %v68 = vmul.f32 %v67, 0.6931472
      %v69 = vsub.f32 0.0, %v66
      %v70 = vsub.f32 0.0, %v68
      %v71 = vstv %s57
      %v72 = vmul.f32 %v69, %v71
      %v73 = vmul.f32 %v70, %v71
      %74 = vst [vmem:[#allocation6] sm:$0xff] %v72
      %75 = vst [vmem:[#allocation6 + $0x8] sm:$0xff] %v73
    $region21: #{tpu_custom_call.1} parent=1 // pred_fallthru
      _
    %p76 = scmp.gt.f32.partialorder %s27, 0.0
    // Predicated region
    $region22: #{tpu_custom_call.1} parent=1 // pred_check
      %p77 = pneg %p76
    $region23: #{tpu_custom_call.1} parent=1 // pred_check_branch
      %79 = sbr.rel (%p77) target = $region25
    $region24: #{tpu_custom_call.1} parent=1 // pred_region
      %v80 = vld [vmem:[#allocation3] sm:$0xff]
      %v81 = vld [vmem:[#allocation3 + $0x8] sm:$0xff]
      %v82 = vstv %s27
      %v83 = vrcp.pop %v82
      %v84 = vmul.f32 %v82, %v83
      %v85 = vsub.f32 1.0, %v84
      %v86 = vmul.f32 %v83, %v85
      %v87 = vadd.f32 %v83, %v86
      %vm88 = vweird.f32 %v82
      %vm89 = vweird.f32 %v83
      %vm90 = vmor %vm88, %vm89
      %v91 = vsel %vm90, %v83, %v87
      %v92 = vand.u32 2147483647, %v82
      %vm93 = vcmp.eq.f32.partialorder %v92, 8.507059e+37
      %v94 = vand.u32 %v82, 2147483648
      %v95 = vor.u32 1.1754944e-38, %v94
      %v96 = vsel %vm93, %v95, %v91
      %s97 = vtos %v96
      %v98 = vstv %s27
      %v99 = vmul.f32 %v98, %v80
      %v100 = vmul.f32 %v98, %v81
      %v101 = vmul.f32 %v99, 1.442695
      %v102 = vpow.pop %v101
      %v103 = vmul.f32 %v100, 1.442695
      %v104 = vpow.pop %v103
      %v105 = vsub.f32 %v102, 1.0
      %v106 = vsub.f32 %v104, 1.0
      %v107 = vstv %s97
      %v108 = vmul.f32 %v105, %v107
      %v109 = vmul.f32 %v106, %v107
      %v110 = vadd.f32 %v108, %v98
      %v111 = vadd.f32 %v109, %v98
      %112 = vst [vmem:[#allocation6] sm:$0xff] %v110
      %113 = vst [vmem:[#allocation6 + $0x8] sm:$0xff] %v111
    $region25: #{tpu_custom_call.1} parent=1 // pred_fallthru
      _
    // Predicated region
    $region26: #{tpu_custom_call.1} parent=1 // pred_check
      _
    $region27: #{tpu_custom_call.1} parent=1 // pred_check_branch
      %115 = sbr.rel (0) target = $region29
    $region28: #{tpu_custom_call.1} parent=1 // pred_region
      %117 = vsyncadd [#allocation5], 0
      %s119 = sshll.u32 [#allocation6], 4
      %s120 = int_to_ptr.vmem [resolvable:$true] %s119
      %s121 = sshll.u32 %s2, 4
      %s122 = int_to_ptr.hbm [resolvable:$true] %s121
      %124 = dma.vmem_to_hbm [thread:$0]  %s120, 256, %s122, [#allocation5]
    $region29: #{tpu_custom_call.1} parent=1 // pred_fallthru
      _
    // Predicated region
    $region30: #{tpu_custom_call.1} parent=1 // pred_check
      _
    $region31: #{tpu_custom_call.1} parent=1 // pred_check_branch
      %126 = sbr.rel (0) target = $region33
    $region32: #{tpu_custom_call.1} parent=1 // pred_region
      %128 = dma.done [#allocation5], 256
    $region33: #{tpu_custom_call.1} parent=1 // pred_fallthru
      _
    %129 = vsyncpa [#allocation4], 1
    %130 = vsyncpa [#allocation5], 1

</llo_original>
